<compile_context>
chip_gen: v7x
topology: tpu7x:2x2x1
jax: 0.10.0
libtpu: 0.0.40
codegen_flags: <defaults>
</compile_context>

<pallas_src>
import functools
import math

import jax
import jax.numpy as jnp
from jax.experimental import pallas as pl
from jax.experimental.pallas import tpu as pltpu


def _proj_kernel(x_ref, w_ref, b_ref, o_ref):
    # One row tile of (grouped) patches times the resident block-diagonal
    # weight: bf16 x bf16 -> f32 accumulation on the MXU, plus bias.
    acc = jnp.dot(x_ref[...], w_ref[...], preferred_element_type=jnp.float32)
    o_ref[...] = (acc + b_ref[...]).astype(o_ref.dtype)


def _cdiv(a, b):
    return -(-a // b)


def _round_up(v, m):
    return ((v + m - 1) // m) * m


def _vmem_cap_bytes():
    """Generation-aware scoped-VMEM ceiling (bytes)."""
    cap = 48 * 1024 * 1024          # safe on every generation (v7x phys = 64 MiB)
    try:
        fn = getattr(pltpu, "get_tpu_info", None)
        if fn is not None:
            info = fn()
            for name in ("vmem_capacity_bytes", "vmem_size_bytes", "vmem_bytes"):
                v = getattr(info, name, None)
                if v:
                    cap = min(int(v) * 3 // 4, 96 * 1024 * 1024)
                    break
    except Exception:
        pass
    return cap


def _pick_row_tile(mg, hbm_row_bytes, vmem_per_row, vmem_fixed, vmem_cap):
    """Rows (of the grouped patch matrix) per grid step."""
    if mg <= 8:
        return mg
    # ~8 MiB of HBM traffic per step keeps the ~0.35 us fixed per-step cost
    # under a few percent even at v7x's 3.2 TB/s; cap at 4096 rows.
    target = max(256, min(4096, (8 * 1024 * 1024) // max(hbm_row_bytes, 1)))
    target = max(8, (target // 8) * 8)
    if mg <= 2 * target:
        # Small / medium problem: split into ~2 tiles so both v7x TCs get work.
        tm = max(8, _round_up(_cdiv(mg, 2), 8))
    else:
        tm = target
    # Shrink the tile (never clamp the VMEM limit below the requirement) until
    # the double-buffered tiles fit the generation-aware VMEM budget.
    while tm > 8 and vmem_fixed + vmem_per_row * tm > vmem_cap:
        tm = max(8, ((tm // 2) // 8) * 8)
    # Prefer an even number of grid steps: v7x shards the "parallel" axis
    # across 2 TensorCores and an odd step count gives a 2:1 imbalance.
    steps = _cdiv(mg, tm)
    if steps > 1 and steps % 2 == 1:
        tm2 = max(8, _round_up(_cdiv(mg, steps + 1), 8))
        if _cdiv(mg, tm2) % 2 == 0:
            tm = tm2
    return tm


def _matmul_bias(xg, wg, bg, out_dtype):
    """xg: [Mg, Kg] bf16, wg: [Kg, Dg] bf16, bg: [1, Dg] f32 -> [Mg, Dg]."""
    mg, kg = xg.shape
    dg = wg.shape[1]
    xb = jnp.dtype(xg.dtype).itemsize
    wb = jnp.dtype(wg.dtype).itemsize
    ob = jnp.dtype(out_dtype).itemsize

    vmem_cap = _vmem_cap_bytes()
    # TODO(synk): pipeline_mode=pl.Buffered(1) on the constant-index weight /
    # bias specs would drop their second VMEM buffer; left out until that
    # lowering is verified on all generations, so budget two buffers here.
    vmem_fixed = 2 * kg * dg * wb + 2 * dg * 4 + (4 << 20)   # weight + bias + scratch headroom
    vmem_per_row = 2 * kg * xb + 2 * dg * ob                 # double-buffered x / out tiles
    tm = _pick_row_tile(mg, kg * xb + dg * ob, vmem_per_row, vmem_fixed, vmem_cap)

    vmem_bytes = vmem_fixed + vmem_per_row * tm
    vmem_limit = int(vmem_bytes if vmem_bytes <= vmem_cap
                     else min(vmem_bytes, 100 * 1024 * 1024))

    cost = pl.CostEstimate(
        flops=2 * mg * kg * dg,
        transcendentals=0,
        bytes_accessed=mg * kg * xb + kg * dg * wb + dg * 4 + mg * dg * ob,
    )

    return pl.pallas_call(
        _proj_kernel,
        out_shape=jax.ShapeDtypeStruct((mg, dg), out_dtype),
        grid_spec=pltpu.PrefetchScalarGridSpec(
            num_scalar_prefetch=0,
            grid=(_cdiv(mg, tm),),
            in_specs=[
                # TODO(synk): sweep pipeline_mode=pl.Buffered(3) here if a
                # trace shows exposed DMA on the dominant read stream.
                pl.BlockSpec((tm, kg), lambda i: (i, 0)),   # row tile of patches
                pl.BlockSpec((kg, dg), lambda i: (0, 0)),   # resident weight
                pl.BlockSpec((1, dg), lambda i: (0, 0)),    # resident bias
            ],
            out_specs=pl.BlockSpec((tm, dg), lambda i: (i, 0)),
        ),
        compiler_params=pltpu.CompilerParams(
            dimension_semantics=("parallel",),
            vmem_limit_bytes=vmem_limit,
            # Let XLA fuse the im2col transpose / pad / bf16 cast producing xg
            # into the kernel's input stream instead of materializing it.
            allow_input_fusion=[True, False, False],
        ),
        cost_estimate=cost,
    )(xg, wg, bg)


@functools.partial(
    jax.jit,
    static_argnames=("patch_size", "temporal_patch_size", "out_dtype"))
def patch_embed_3d(x, weight, bias, *, patch_size=(4, 4),
                   temporal_patch_size=2, out_dtype=jnp.bfloat16):
    """Forward of PatchEmbed3D (norm_layer=None).

    Args:
      x:      [B, C, T, H, W] float32 (T, H, W divisible by the patch sizes)
      weight: [D, C, tp, ph, pw]  (PyTorch Conv3d weight layout)
      bias:   [D]
      out_dtype: output dtype; bf16 by default (halves the store stream and
        downstream Swin LayerNorm is bf16-tolerant), pass jnp.float32 to match
        the PyTorch module's dtype exactly.
    Returns:
      [B, L, D] with L = (T//tp) * (H//ph) * (W//pw).
      Note: operands are rounded to bf16 (f32 accumulation), so numerics differ
      slightly from a pure-f32 PyTorch Conv3d.
    """
    B, C, T, H, W = x.shape
    tp = temporal_patch_size
    ph, pw = patch_size
    D = int(weight.shape[0])
    Tp, Hp, Wp = T // tp, H // ph, W // pw
    L = Tp * Hp * Wp
    M = B * L
    K = C * tp * ph * pw

    # Lane-density: group g consecutive patch rows into one kernel row so the
    # kernel's last dims (g*K_pad inputs, g*D outputs) are multiples of 128 —
    # fully lane-dense loads/stores, no vst.msk.  g is capped at 4 so the kron
    # block-diagonal's g-fold MXU-flop multiplier cannot flip v5e (~240
    # flops/byte ridge) compute-bound; for unlucky D with g > 4 we zero-pad D
    # up to a multiple of 128 instead.
    g = 128 // math.gcd(D, 128)
    if g > 4:
        g = 1
        D_pad = _round_up(D, 128)
    else:
        D_pad = D
    K_pad = _round_up(K, max(1, 128 // g))
    M_pad = _round_up(M, g)

    # im2col: [B,C,T,H,W] -> [M, K] patch matrix; rows in (B, Tp, Hp, Wp)
    # order (== PyTorch flatten(2).transpose(1,2)), columns in (C, tp, ph, pw)
    # order (== Conv3d weight layout).  Kept as one lazy chain so
    # allow_input_fusion can feed it straight into the kernel.
    xp = x.reshape(B, C, Tp, tp, Hp, ph, Wp, pw)
    xp = xp.transpose(0, 2, 4, 6, 1, 3, 5, 7).reshape(M, K)
    xm = jnp.pad(xp, ((0, M_pad - M), (0, K_pad - K))).astype(jnp.bfloat16)

    wm = weight.reshape(D, K).T.astype(jnp.bfloat16)              # [K, D]
    wm = jnp.pad(wm, ((0, K_pad - K), (0, D_pad - D)))            # [K_pad, D_pad]
    bm = jnp.pad(bias.astype(jnp.float32), (0, D_pad - D))        # [D_pad]

    if g > 1:
        wg = jnp.kron(jnp.eye(g, dtype=wm.dtype), wm)             # [g*K_pad, g*D] block-diag
        bg = jnp.tile(bm, g).reshape(1, g * D_pad)
    else:
        wg = wm
        bg = bm.reshape(1, D_pad)
    xg = xm.reshape(M_pad // g, g * K_pad)                        # bitcast-free reshape

    out = _matmul_bias(xg, wg, bg, out_dtype)                     # [Mg, g*D_pad]

    # [Mg, g*D_pad] row-major == [M_pad, D_pad]; rows are already in
    # (B, Tp, Hp, Wp) order; drop padded rows / columns.
    out = out.reshape(M_pad, D_pad)[:M, :D]
    return out.reshape(B, L, D)


def _reference_conv3d(x, weight, bias, patch_size, temporal_patch_size):
    tp = temporal_patch_size
    ph, pw = patch_size
    y = jax.lax.conv_general_dilated(
        x, weight,
        window_strides=(tp, ph, pw),
        padding="VALID",
        dimension_numbers=("NCDHW", "OIDHW", "NCDHW"),
    )
    y = y + bias.reshape(1, -1, 1, 1, 1)
    B, D = y.shape[0], y.shape[1]
    return y.reshape(B, D, -1).transpose(0, 2, 1)


def _run_case(key, *, B, C, T, H, W, patch_size, temporal_patch_size,
              embed_dim, out_dtype, atol, rtol):
    kx, kw, kb = jax.random.split(key, 3)
    x = jax.random.normal(kx, (B, C, T, H, W), dtype=jnp.float32)
    # Conv3d weight shape: (embed_dim, in_chans, tp, ph, pw)
    weight = jax.random.normal(
        kw, (embed_dim, C, temporal_patch_size, *patch_size),
        dtype=jnp.float32) * 0.02
    bias = jax.random.normal(kb, (embed_dim,), dtype=jnp.float32) * 0.02

    out = patch_embed_3d(
        x, weight, bias,
        patch_size=patch_size,
        temporal_patch_size=temporal_patch_size,
        out_dtype=out_dtype)
    out = jax.block_until_ready(out)

    # Reference: same conv with inputs rounded to bf16 (matching the kernel's
    # bf16-operand / f32-accumulation precision).
    x_bf = x.astype(jnp.bfloat16).astype(jnp.float32)
    w_bf = weight.astype(jnp.bfloat16).astype(jnp.float32)
    ref = _reference_conv3d(x_bf, w_bf, bias, patch_size, temporal_patch_size)

    L = (T // temporal_patch_size) * (H // patch_size[0]) * (W // patch_size[1])
    assert out.shape == (B, L, embed_dim), out.shape
    assert out.dtype == jnp.dtype(out_dtype), out.dtype
    assert jnp.allclose(out.astype(jnp.float32), ref, atol=atol, rtol=rtol), \
        "mismatch vs conv reference"


if __name__ == "__main__":
    key = jax.random.PRNGKey(0)
    k1, k2, k3 = jax.random.split(key, 3)

    # Case 1: small canonical shapes, f32 output, even grid, M % g == 0.
    _run_case(k1, B=2, C=3, T=4, H=16, W=16, patch_size=(4, 4),
              temporal_patch_size=2, embed_dim=32,
              out_dtype=jnp.float32, atol=1e-3, rtol=1e-3)

    # Case 2: bf16 output, Mg % tm != 0 -> exercises the masked boundary tile.
    _run_case(k2, B=2, C=3, T=4, H=20, W=16, patch_size=(4, 4),
              temporal_patch_size=2, embed_dim=96,
              out_dtype=jnp.bfloat16, atol=2e-2, rtol=2e-2)

    # Case 3: bf16 output, M % g != 0 -> exercises the zero-row padding path.
    _run_case(k3, B=1, C=3, T=2, H=12, W=12, patch_size=(4, 4),
              temporal_patch_size=2, embed_dim=96,
              out_dtype=jnp.bfloat16, atol=2e-2, rtol=2e-2)

    print("KERNEL_OK")
</pallas_src>

<mosaic_0001>
module attributes {stable_mosaic.version = 11 : i64} {
  func.func @_proj_kernel(%arg0: i32, %arg1: memref<8x384xbf16, #tpu.memory_space<vmem>>, %arg2: memref<384x128xbf16, #tpu.memory_space<vmem>>, %arg3: memref<1x128xf32, #tpu.memory_space<vmem>>, %arg4: memref<8x128xf32, #tpu.memory_space<vmem>>) attributes {dimension_semantics = [#tpu.dimension_semantics<parallel>], iteration_bounds = array<i64: 2>, scalar_prefetch = 0 : i64, scratch_operands = 0 : i64, tpu.core_type = #tpu.core_type<tc>, window_params = [{transform_indices = @transform_0, window_bounds = array<i64: 8, 384>}, {pipeline_mode = #tpu.pipeline_mode<synchronous>, transform_indices = @transform_1, window_bounds = array<i64: 384, 128>}, {pipeline_mode = #tpu.pipeline_mode<synchronous>, transform_indices = @transform_2, window_bounds = array<i64: 1, 128>}, {transform_indices = @transform_3, window_bounds = array<i64: 8, 128>}]} {
    %c0 = arith.constant 0 : index
    %c0_0 = arith.constant 0 : index
    %0 = vector.load %arg1[%c0, %c0_0] : memref<8x384xbf16, #tpu.memory_space<vmem>>, vector<8x384xbf16>
    %c0_1 = arith.constant 0 : index
    %c0_2 = arith.constant 0 : index
    %1 = vector.load %arg2[%c0_1, %c0_2] : memref<384x128xbf16, #tpu.memory_space<vmem>>, vector<384x128xbf16>
    %cst = arith.constant dense<0.000000e+00> : vector<8x128xf32>
    %2 = tpu.matmul %0, %1, %cst {dimension_numbers = #tpu.dot_dimension_numbers<[1], [0], [0], [1], [0, 0, 1, 1], [], []>} : vector<8x384xbf16>, vector<384x128xbf16>, vector<8x128xf32> -> vector<8x128xf32>
    %c0_3 = arith.constant 0 : index
    %c0_4 = arith.constant 0 : index
    %3 = vector.load %arg3[%c0_3, %c0_4] : memref<1x128xf32, #tpu.memory_space<vmem>>, vector<1x128xf32>
    %4 = vector.broadcast %3 : vector<1x128xf32> to vector<8x128xf32>
    %5 = arith.addf %2, %4 : vector<8x128xf32>
    %c0_5 = arith.constant 0 : index
    %c0_6 = arith.constant 0 : index
    %6 = vector.load %arg4[%c0_5, %c0_6] : memref<8x128xf32, #tpu.memory_space<vmem>>, vector<8x128xf32>
    tpu.vector_store %arg4[%c0_5, %c0_6], %5 {strides = array<i32>} : memref<8x128xf32, #tpu.memory_space<vmem>>, vector<8x128xf32>,
    return
  }
  func.func @transform_0(%arg0: i32) -> (i32, i32) {
    %c0_i32 = arith.constant 0 : i32
    %c0_i32_0 = arith.constant 0 : i32
    return %arg0, %c0_i32 : i32, i32
  }
  func.func @transform_1(%arg0: i32) -> (i32, i32) {
    %c0_i32 = arith.constant 0 : i32
    %c0_i32_0 = arith.constant 0 : i32
    %c0_i32_1 = arith.constant 0 : i32
    return %c0_i32, %c0_i32_0 : i32, i32
  }
  func.func @transform_2(%arg0: i32) -> (i32, i32) {
    %c0_i32 = arith.constant 0 : i32
    %c0_i32_0 = arith.constant 0 : i32
    %c0_i32_1 = arith.constant 0 : i32
    return %c0_i32, %c0_i32_0 : i32, i32
  }
  func.func @transform_3(%arg0: i32) -> (i32, i32) {
    %c0_i32 = arith.constant 0 : i32
    %c0_i32_0 = arith.constant 0 : i32
    return %arg0, %c0_i32 : i32, i32
  }
}

</mosaic_0001>

<llo_original>
// kernel: tile.8
$region0: #{tile.8}
  #allocation0 [shape = 's32[1]{0}', space=sflag, size = 0x4, scoped, tag = 'scoped memory for tile.8']
  %s0 = inlined_call_operand.vmem [shape: f32[32], index: 0, kind: input, shape index: {}]
  %s1 = inlined_call_operand.vmem [shape: f32[4,32], index: 1, kind: output, shape index: {}]
  // Predicated region
  $region2: #{tile.8} parent=0 // pred_check
    _
  $region3: #{tile.8} parent=0 // pred_check_branch
    %3 = sbr.rel (0) target = $region5
  $region4: #{tile.8} parent=0 // pred_region
    _
  $region5: #{tile.8} parent=0 // pred_fallthru
    _
  %v4 = vld [vmem:[%s0] ss:$0 sm:$0xff]
  %5 = vst [vmem:[%s1] sm:$0xf] %v4

// kernel: tile.9
$region0: #{tile.9}
  %s0 = inlined_call_operand.vmem [shape: f32[4,32], index: 0, kind: input, shape index: {}]
  %s1 = inlined_call_operand.vmem [shape: f32[1,128], index: 1, kind: output, shape index: {}]
  $region1: #{tile.9} parent=0
    #allocation0 [shape = 'u8[4096]{0}', space=vmem, size = 0x1000, scoped, tag = 'scoped mem for output reshape']
    #allocation1 [shape = 'u8[4096]{0}', space=vmem, size = 0x1000, scoped, tag = 'scoped mem for input reshape']
    %s3 = sshllo.u32 0, 4
    %v4 = vld [vmem:[%s0] sm:%s3]
    %5 = vst [vmem:[#allocation1] sm:%s3] %v4
    %v6 = vld [vmem:[#allocation1] sm:$0x1]
    %vm7 = vcmask 261120
    %8 = vst.msk [vmem:[#allocation0] sm:$0x1] %vm7, %v6
    %s9 = scalar_lea.vmem [#allocation1], 3
    %v10 = vld [vmem:[%s9] sm:$0x1]
    %11 = vrot.lane.b32.xlu0 %v10, 96
    %v12 = vpop.permute.xlu0 %11
    %vm13 = vcmask 1048320
    %14 = vst.msk [vmem:[#allocation0] sm:$0x1] %vm13, %v12
    %s15 = scalar_lea.vmem [#allocation1], 2
    %v16 = vld [vmem:[%s15] sm:$0x1]
    %17 = vrot.lane.b32.xlu0 %v16, 64
    %v18 = vpop.permute.xlu0 %17
    %vm19 = vcmask 785920
    %20 = vst.msk [vmem:[#allocation0] sm:$0x1] %vm19, %v18
    %s21 = scalar_lea.vmem [#allocation1], 1
    %v22 = vld [vmem:[%s21] sm:$0x1]
    %23 = vrot.lane.b32.xlu0 %v22, 32
    %v24 = vpop.permute.xlu0 %23
    %vm25 = vcmask 523520
    %26 = vst.msk [vmem:[#allocation0] sm:$0x1] %vm25, %v24
    %s28 = sshllo.u32 0, 1
    %v30 = vld [vmem:[#allocation0] sm:%s28]
    %s31 = sshllo.u32 0, 1
    %32 = vst [vmem:[%s1] sm:%s31] %v30

// kernel: patch_embed_3d.1
$region0: #{patch_embed_3d.1}
  #allocation0 [shape = 'u32[]', space=smem, size = 0x4, offset = 0x4, fixed_abs, tag = 'smem constant byte address 0x4 - core index']
  #allocation1 [shape = 'u32[144,128]{1,0:T(1,128)}', space=vmem, size = 0x12000, scoped, tag = 'internal scratch']
  %s0 = inlined_call_operand.vmem [shape: bf16[16,384], index: 0, kind: input, shape index: {}]
  %s1 = inlined_call_operand.vmem [shape: bf16[384,128], index: 1, kind: input, shape index: {}]
  %s2 = inlined_call_operand.vmem [shape: f32[1,128], index: 2, kind: input, shape index: {}]
  %s3 = inlined_call_operand.vmem [shape: f32[16,128], index: 3, kind: output, shape index: {}]
  %s4 = sld [smem:[#allocation0]]
  $region45: #{patch_embed_3d.1} parent=0
    _
  %s6 = ssub.s32 1, %s4
  %s7 = scalar_select 0, %s6, %s4
  loop: start=0, step=1, limit=4
  $region2: #{patch_embed_3d.1} parent=0 // loop_pre_header
    _
  $region3: #{patch_embed_3d.1} parent=0 // loop_header
    %s9 = sphi 0, %s13
    %p10 = scmp.ge.s32.totalorder %s9, 4
    %s19 = sphi 0, %s21
    %s22 = sphi 0, %s19
    %s23 = sphi 0, %s22
    %s39 = sphi 0, %s23
    %s43 = sphi 0, %s43
    %s45 = sphi 0, %s43
    %s46 = sphi 0, %s45
    %s60 = sphi 0, %s46
    %s64 = sphi 0, %s64
    %s66 = sphi 0, %s64
    %s67 = sphi 0, %s66
    %s81 = sphi 0, %s67
    %s87 = sphi 0, %s89
    %s90 = sphi 0, %s87
    %s91 = sphi 0, %s90
    %s107 = sphi 0, %s91
  $region4: #{patch_embed_3d.1} parent=0 // loop_header_branch
    %12 = sbr.rel (%p10) target = $region8
  $region5: #{patch_embed_3d.1} parent=0 // loop_body
    %s14 = ssub.s32 %s9, 1
    %s15 = ssub.s32 %s9, 2
    %s16 = sadd.s32 %s9, 1
    %s17 = ssub.s32 %s9, %s16
    %p18 = scmp.eq.s32.totalorder %s17, 0
    %s20 = sadd.s32 %s19, 1
    %s21 = scalar_select %p18, %s19, %s20
    %p24 = pneg %p18
    %p25 = scmp.eq.s32.totalorder %s9, 1
    %p26 = por %p24, %p25
    %p27 = scmp.ne.s32.totalorder %s19, %s22
    %p28 = scmp.eq.s32.totalorder %s9, 0
    %p29 = por %p27, %p28
    %p30 = scmp.ne.s32.totalorder %s19, %s22
    %p31 = scmp.eq.s32.totalorder %s14, 1
    %p32 = por %p30, %p31
    %p33 = scmp.ne.s32.totalorder %s22, %s23
    %p34 = scmp.eq.s32.totalorder %s14, 0
    %p35 = por %p33, %p34
    %p36 = scmp.ne.s32.totalorder %s22, %s23
    %p37 = scmp.eq.s32.totalorder %s15, 1
    %p38 = por %p36, %p37
    %p40 = scmp.ne.s32.totalorder %s23, %s39
    %p41 = scmp.eq.s32.totalorder %s15, 0
    %p42 = por %p40, %p41
    %s44 = sadd.s32 %s43, 1
    %p47 = scmp.eq.s32.totalorder %s9, 1
    %p48 = scmp.ne.s32.totalorder %s43, %s45
    %p49 = scmp.eq.s32.totalorder %s9, 0
    %p50 = por %p48, %p49
    %p51 = scmp.ne.s32.totalorder %s43, %s45
    %p52 = scmp.eq.s32.totalorder %s14, 1
    %p53 = por %p51, %p52
    %p54 = scmp.ne.s32.totalorder %s45, %s46
    %p55 = scmp.eq.s32.totalorder %s14, 0
    %p56 = por %p54, %p55
    %p57 = scmp.ne.s32.totalorder %s45, %s46
    %p58 = scmp.eq.s32.totalorder %s15, 1
    %p59 = por %p57, %p58
    %p61 = scmp.ne.s32.totalorder %s46, %s60
    %p62 = scmp.eq.s32.totalorder %s15, 0
    %p63 = por %p61, %p62
    %s65 = sadd.s32 %s64, 1
    %p68 = scmp.eq.s32.totalorder %s9, 1
    %p69 = scmp.ne.s32.totalorder %s64, %s66
    %p70 = scmp.eq.s32.totalorder %s9, 0
    %p71 = por %p69, %p70
    %p72 = scmp.ne.s32.totalorder %s64, %s66
    %p73 = scmp.eq.s32.totalorder %s14, 1
    %p74 = por %p72, %p73
    %p75 = scmp.ne.s32.totalorder %s66, %s67
    %p76 = scmp.eq.s32.totalorder %s14, 0
    %p77 = por %p75, %p76
    %p78 = scmp.ne.s32.totalorder %s66, %s67
    %p79 = scmp.eq.s32.totalorder %s15, 1
    %p80 = por %p78, %p79
    %p82 = scmp.ne.s32.totalorder %s67, %s81
    %p83 = scmp.eq.s32.totalorder %s15, 0
    %p84 = por %p82, %p83
    %s85 = ssub.s32 %s9, %s16
    %p86 = scmp.eq.s32.totalorder %s85, 0
    %s88 = sadd.s32 %s87, 1
    %s89 = scalar_select %p86, %s87, %s88
    %p92 = pneg %p86
    %p93 = scmp.eq.s32.totalorder %s9, 1
    %p94 = por %p92, %p93
    %p95 = scmp.ne.s32.totalorder %s87, %s90
    %p96 = scmp.eq.s32.totalorder %s9, 0
    %p97 = por %p95, %p96
    %p98 = scmp.ne.s32.totalorder %s87, %s90
    %p99 = scmp.eq.s32.totalorder %s14, 1
    %p100 = por %p98, %p99
    %p101 = scmp.ne.s32.totalorder %s90, %s91
    %p102 = scmp.eq.s32.totalorder %s14, 0
    %p103 = por %p101, %p102
    %p104 = scmp.ne.s32.totalorder %s90, %s91
    %p105 = scmp.eq.s32.totalorder %s15, 1
    %p106 = por %p104, %p105
    %p108 = scmp.ne.s32.totalorder %s91, %s107
    %p109 = scmp.eq.s32.totalorder %s15, 0
    %p110 = por %p108, %p109
    %p111 = scmp.le.s32.totalorder 1, %s9
    %p112 = scmp.lt.s32.totalorder %s9, 3
    %p113 = pnand %p111, %p112
    %p114 = pneg %p113
    // Predicated region
    $region9: #{patch_embed_3d.1} parent=5 // pred_check
      _
    $region10: #{patch_embed_3d.1} parent=5 // pred_check_branch
      %116 = sbr.rel (%p113) target = $region12
    $region11: #{patch_embed_3d.1} parent=5 // pred_region
      %s117 = ssub.s32 %s9, 1
      // Predicated region
      $region13: #{patch_embed_3d.1} parent=11 // pred_check
        %p118 = pneg %p56
      $region14: #{patch_embed_3d.1} parent=11 // pred_check_branch
        %120 = sbr.rel (%p118) target = $region16
      $region15: #{patch_embed_3d.1} parent=11 // pred_region
        _
      $region16: #{patch_embed_3d.1} parent=11 // pred_fallthru
        _
      // Predicated region
      $region17: #{patch_embed_3d.1} parent=11 // pred_check
        %p121 = pneg %p77
      $region18: #{patch_embed_3d.1} parent=11 // pred_check_branch
        %123 = sbr.rel (%p121) target = $region20
      $region19: #{patch_embed_3d.1} parent=11 // pred_region
        _
      $region20: #{patch_embed_3d.1} parent=11 // pred_fallthru
        _
    $region12: #{patch_embed_3d.1} parent=5 // pred_fallthru
      _
    %p124 = scmp.lt.s32.totalorder %s9, 2
    // Predicated region
    $region21: #{patch_embed_3d.1} parent=5 // pred_check
      %p125 = pneg %p124
    $region22: #{patch_embed_3d.1} parent=5 // pred_check_branch
      %127 = sbr.rel (%p125) target = $region24
    $region23: #{patch_embed_3d.1} parent=5 // pred_region
      // Predicated region
      $region25: #{patch_embed_3d.1} parent=23 // pred_check
        %p128 = pneg %p29
      $region26: #{patch_embed_3d.1} parent=23 // pred_check_branch
        %130 = sbr.rel (%p128) target = $region28
      $region27: #{patch_embed_3d.1} parent=23 // pred_region
        %p131 = scmp.lt.s32.totalorder %s9, 1
        %s132 = scalar_select %p131, %s9, 1
        %s133 = smul.addr %s132, 3
        %s134 = smul.addr %s133, 4
        %s135 = scalar_lea.vmem %s0, %s134
      $region28: #{patch_embed_3d.1} parent=23 // pred_fallthru
        _
    $region24: #{patch_embed_3d.1} parent=5 // pred_fallthru
      _
    %p136 = scmp.le.s32.totalorder 1, %s9
    %p137 = scmp.lt.s32.totalorder %s9, 3
    %p138 = pnand %p136, %p137
    %p139 = pneg %p138
    // Predicated region
    $region29: #{patch_embed_3d.1} parent=5 // pred_check
      _
    $region30: #{patch_embed_3d.1} parent=5 // pred_check_branch
      %141 = sbr.rel (%p138) target = $region32
    $region31: #{patch_embed_3d.1} parent=5 // pred_region
      %s142 = ssub.s32 %s9, 1
      %p143 = scmp.lt.s32.totalorder %s14, 1
      %s144 = scalar_select %p143, %s14, 1
      %s145 = smul.addr %s144, 3
      %s146 = smul.addr %s145, 4
      %s147 = scalar_lea.vmem %s0, %s146
      %p148 = pneg %p35
      %p149 = pneg %p32
      %p150 = pneg %p56
      %p151 = pneg %p53
      %p152 = pneg %p77
      %p153 = pneg %p74
      %p154 = pneg %p103
      %p155 = pneg %p100
      %p156 = scmp.lt.s32.totalorder %s14, 1
      %s157 = scalar_select %p156, %s14, 1
      %s158 = smul.addr %s157, 8
      %s159 = scalar_lea.vmem %s3, %s158
      %p160 = scmp.lt.s32.totalorder %s14, 1
      %s161 = scalar_select %p160, %s14, 1
      %s162 = smul.addr %s161, 3
      %s163 = smul.addr %s162, 4
      %s164 = scalar_lea.vmem %s0, %s163
      %p165 = scmp.lt.s32.totalorder %s14, 1
      %s166 = scalar_select %p165, %s14, 1
      %s167 = smul.addr %s166, 8
      %s168 = scalar_lea.vmem %s3, %s167
      %v170 = vld [vmem:[%s164] sm:$0xff]
      %v171 = vld [vmem:[%s164 + $0x8] sm:$0xf]
      %v172 = vld [vmem:[%s1] sm:$0xf]
      %v173 = vld [vmem:[%s1 + $0x4] sm:$0xf]
      %v174 = vld [vmem:[%s1 + $0x8] sm:$0xf]
      %v175 = vld [vmem:[%s1 + $0xc] sm:$0xf]
      %v176 = vld [vmem:[%s1 + $0x10] sm:$0xf]
      %v177 = vld [vmem:[%s1 + $0x14] sm:$0xf]
      %v178 = vld [vmem:[%s1 + $0x18] sm:$0xf]
      %v179 = vld [vmem:[%s1 + $0x1c] sm:$0xf]
      %v180 = vld [vmem:[%s1 + $0x20] sm:$0xf]
      %v181 = vld [vmem:[%s1 + $0x24] sm:$0xf]
      %v182 = vld [vmem:[%s1 + $0x28] sm:$0xf]
      %v183 = vld [vmem:[%s1 + $0x2c] sm:$0xf]
      %v184 = vld [vmem:[%s1 + $0x30] sm:$0xf]
      %v185 = vld [vmem:[%s1 + $0x34] sm:$0xf]
      %v186 = vld [vmem:[%s1 + $0x38] sm:$0xf]
      %v187 = vld [vmem:[%s1 + $0x3c] sm:$0xf]
      %v188 = vld [vmem:[%s1 + $0x40] sm:$0xf]
      %v189 = vld [vmem:[%s1 + $0x44] sm:$0xf]
      %v190 = vld [vmem:[%s1 + $0x48] sm:$0xf]
      %v191 = vld [vmem:[%s1 + $0x4c] sm:$0xf]
      %v192 = vld [vmem:[%s1 + $0x50] sm:$0xf]
      %v193 = vld [vmem:[%s1 + $0x54] sm:$0xf]
      %v194 = vld [vmem:[%s1 + $0x58] sm:$0xf]
      %v195 = vld [vmem:[%s1 + $0x5c] sm:$0xf]
      %v196 = vld [vmem:[%s1 + $0x60] sm:$0xf]
      %v197 = vld [vmem:[%s1 + $0x64] sm:$0xf]
      %v198 = vld [vmem:[%s1 + $0x68] sm:$0xf]
      %v199 = vld [vmem:[%s1 + $0x6c] sm:$0xf]
      %v200 = vld [vmem:[%s1 + $0x70] sm:$0xf]
      %v201 = vld [vmem:[%s1 + $0x74] sm:$0xf]
      %v202 = vld [vmem:[%s1 + $0x78] sm:$0xf]
      %v203 = vld [vmem:[%s1 + $0x7c] sm:$0xf]
      %v204 = vld [vmem:[%s1 + $0x80] sm:$0xf]
      %v205 = vld [vmem:[%s1 + $0x84] sm:$0xf]
      %v206 = vld [vmem:[%s1 + $0x88] sm:$0xf]
      %v207 = vld [vmem:[%s1 + $0x8c] sm:$0xf]
      %v208 = vld [vmem:[%s1 + $0x90] sm:$0xf]
      %v209 = vld [vmem:[%s1 + $0x94] sm:$0xf]
      %v210 = vld [vmem:[%s1 + $0x98] sm:$0xf]
      %v211 = vld [vmem:[%s1 + $0x9c] sm:$0xf]
      %v212 = vld [vmem:[%s1 + $0xa0] sm:$0xf]
      %v213 = vld [vmem:[%s1 + $0xa4] sm:$0xf]
      %v214 = vld [vmem:[%s1 + $0xa8] sm:$0xf]
      %v215 = vld [vmem:[%s1 + $0xac] sm:$0xf]
      %v216 = vld [vmem:[%s1 + $0xb0] sm:$0xf]
      %v217 = vld [vmem:[%s1 + $0xb4] sm:$0xf]
      %v218 = vld [vmem:[%s1 + $0xb8] sm:$0xf]
      %v219 = vld [vmem:[%s1 + $0xbc] sm:$0xf]
      %v220 = vld [vmem:[%s2] sm:$0x1]
      %v222 = vlaneseq
      %v223 = vshrl.u32 %v222, 7
      %v224 = vsub.s32 0, %v223
      %v225 = vrot.slane %v220, %v224
      %v229 = vunpack.c.l.b16 %v170
      %v230 = vunpack.c.h.b16 %v170
      %v231 = vunpack.c.l.b16 %v171
      %v232 = vpack.c.b16 %v229, %v229
      %v233 = vpack.c.b16 %v230, %v230
      %v234 = vpack.c.b16 %v231, %v231
      %v286 = vunpack.c.l.b16 %v172
      %v287 = vunpack.c.l.b16 %v173
      %v288 = vunpack.c.l.b16 %v174
      %v289 = vunpack.c.l.b16 %v175
      %v290 = vunpack.c.l.b16 %v176
      %v291 = vunpack.c.l.b16 %v177
      %v292 = vunpack.c.l.b16 %v178
      %v293 = vunpack.c.l.b16 %v179
      %v294 = vunpack.c.l.b16 %v180
      %v295 = vunpack.c.l.b16 %v181
      %v296 = vunpack.c.l.b16 %v182
      %v297 = vunpack.c.l.b16 %v183
      %v298 = vunpack.c.l.b16 %v184
      %v299 = vunpack.c.l.b16 %v185
      %v300 = vunpack.c.l.b16 %v186
      %v301 = vunpack.c.l.b16 %v187
      %v302 = vunpack.c.l.b16 %v188
      %v303 = vunpack.c.l.b16 %v189
      %v304 = vunpack.c.l.b16 %v190
      %v305 = vunpack.c.l.b16 %v191
      %v306 = vunpack.c.l.b16 %v192
      %v307 = vunpack.c.l.b16 %v193
      %v308 = vunpack.c.l.b16 %v194
      %v309 = vunpack.c.l.b16 %v195
      %v310 = vunpack.c.l.b16 %v196
      %v311 = vunpack.c.l.b16 %v197
      %v312 = vunpack.c.l.b16 %v198
      %v313 = vunpack.c.l.b16 %v199
      %v314 = vunpack.c.l.b16 %v200
      %v315 = vunpack.c.l.b16 %v201
      %v316 = vunpack.c.l.b16 %v202
      %v317 = vunpack.c.l.b16 %v203
      %v318 = vunpack.c.l.b16 %v204
      %v319 = vunpack.c.l.b16 %v205
      %v320 = vunpack.c.l.b16 %v206
      %v321 = vunpack.c.l.b16 %v207
      %v322 = vunpack.c.l.b16 %v208
      %v323 = vunpack.c.l.b16 %v209
      %v324 = vunpack.c.l.b16 %v210
      %v325 = vunpack.c.l.b16 %v211
      %v326 = vunpack.c.l.b16 %v212
      %v327 = vunpack.c.l.b16 %v213
      %v328 = vunpack.c.l.b16 %v214
      %v329 = vunpack.c.l.b16 %v215
      %v330 = vunpack.c.l.b16 %v216
      %v331 = vunpack.c.l.b16 %v217
      %v332 = vunpack.c.l.b16 %v218
      %v333 = vunpack.c.l.b16 %v219
      %v334 = vpack.c.b16 %v287, %v286
      %v335 = vpack.c.b16 %v289, %v288
      %v336 = vpack.c.b16 %v291, %v290
      %v337 = vpack.c.b16 %v293, %v292
      %v338 = vpack.c.b16 %v295, %v294
      %v339 = vpack.c.b16 %v297, %v296
      %v340 = vpack.c.b16 %v299, %v298
      %v341 = vpack.c.b16 %v301, %v300
      %v342 = vpack.c.b16 %v303, %v302
      %v343 = vpack.c.b16 %v305, %v304
      %v344 = vpack.c.b16 %v307, %v306
      %v345 = vpack.c.b16 %v309, %v308
      %v346 = vpack.c.b16 %v311, %v310
      %v347 = vpack.c.b16 %v313, %v312
      %v348 = vpack.c.b16 %v315, %v314
      %v349 = vpack.c.b16 %v317, %v316
      %v350 = vpack.c.b16 %v319, %v318
      %v351 = vpack.c.b16 %v321, %v320
      %v352 = vpack.c.b16 %v323, %v322
      %v353 = vpack.c.b16 %v325, %v324
      %v354 = vpack.c.b16 %v327, %v326
      %v355 = vpack.c.b16 %v329, %v328
      %v356 = vpack.c.b16 %v331, %v330
      %v357 = vpack.c.b16 %v333, %v332
      %382 = vmatprep.subr.bf16.mxu0 0
      %383 = vmatpush1.bf16.msra.mxu0 %v334
      %384 = vmatprep.subr.bf16.mxu0 0
      %385 = vmatpush1.bf16.msra.mxu0 %v335
      %386 = vmatprep.subr.bf16.mxu0 0
      %387 = vmatpush1.bf16.msra.mxu0 %v336
      %388 = vmatprep.subr.bf16.mxu0 0
      %389 = vmatpush1.bf16.msra.mxu0 %v337
      %390 = vmatprep.subr.bf16.mxu0 0
      %391 = vmatpush1.bf16.msra.mxu0 %v338
      %392 = vmatprep.subr.bf16.mxu0 0
      %393 = vmatpush1.bf16.msra.mxu0 %v339
      %394 = vmatprep.subr.bf16.mxu0 0
      %395 = vmatpush1.bf16.msra.mxu0 %v340
      %396 = vmatprep.subr.bf16.mxu0 0
      %397 = vmatpush1.bf16.msra.mxu0 %v341
      %398 = vmatprep.subr.bf16.mxu0 0
      %399 = vmatpush1.bf16.msra.mxu0 %v342
      %400 = vmatprep.subr.bf16.mxu0 0
      %401 = vmatpush1.bf16.msra.mxu0 %v343
      %402 = vmatprep.subr.bf16.mxu0 0
      %403 = vmatpush1.bf16.msra.mxu0 %v344
      %404 = vmatprep.subr.bf16.mxu0 0
      %405 = vmatpush1.bf16.msra.mxu0 %v345
      %406 = vmatprep.subr.bf16.mxu0 0
      %407 = vmatpush1.bf16.msra.mxu0 %v346
      %408 = vmatprep.subr.bf16.mxu0 0
      %409 = vmatpush1.bf16.msra.mxu0 %v347
      %410 = vmatprep.subr.bf16.mxu0 0
      %411 = vmatpush1.bf16.msra.mxu0 %v348
      %412 = vmatprep.subr.bf16.mxu0 0
      %413 = vmatpush1.bf16.msra.mxu0 %v349
      %414 = vmatprep.mubr.bf16.mxu0 %v233
      %415 = vmatmul.mubr.bf16.gmra.mrb[0].mxu0 %v232
      %v416 = vpop.f32.mrb[0].mxu0
      %v417 = vadd.f32 %v225, %v416
      %v418 = vpop.f32.mrb[0].mxu0
      %v419 = vpop.f32.mrb[0].mxu0
      %v420 = vpop.f32.mrb[0].mxu0
      %421 = vdwg.mxu0
      %422 = vmatprep.subr.bf16.mxu0 0
      %423 = vmatpush1.bf16.msra.mxu0 %v350
      %424 = vmatprep.subr.bf16.mxu0 0
      %425 = vmatpush1.bf16.msra.mxu0 %v351
      %426 = vmatprep.subr.bf16.mxu0 0
      %427 = vmatpush1.bf16.msra.mxu0 %v352
      %428 = vmatprep.subr.bf16.mxu0 0
      %429 = vmatpush1.bf16.msra.mxu0 %v353
      %430 = vmatprep.subr.bf16.mxu0 0
      %431 = vmatpush1.bf16.msra.mxu0 %v354
      %432 = vmatprep.subr.bf16.mxu0 0
      %433 = vmatpush1.bf16.msra.mxu0 %v355
      %434 = vmatprep.subr.bf16.mxu0 0
      %435 = vmatpush1.bf16.msra.mxu0 %v356
      %436 = vmatprep.subr.bf16.mxu0 0
      %437 = vmatpush1.bf16.msra.mxu0 %v357
      %438 = vmatprep.subr.bf16.mxu0 0
      %439 = vmatpush1.bf16.msra.mxu0 0
      %440 = vmatprep.subr.bf16.mxu0 0
      %441 = vmatpush1.bf16.msra.mxu0 0
      %442 = vmatprep.subr.bf16.mxu0 0
      %443 = vmatpush1.bf16.msra.mxu0 0
      %444 = vmatprep.subr.bf16.mxu0 0
      %445 = vmatpush1.bf16.msra.mxu0 0
      %446 = vmatprep.subr.bf16.mxu0 0
      %447 = vmatpush1.bf16.msra.mxu0 0
      %448 = vmatprep.subr.bf16.mxu0 0
      %449 = vmatpush1.bf16.msra.mxu0 0
      %450 = vmatprep.subr.bf16.mxu0 0
      %451 = vmatpush1.bf16.msra.mxu0 0
      %452 = vmatprep.subr.bf16.mxu0 0
      %453 = vmatpush1.bf16.msra.mxu0 0
      %454 = vmatprep.mubr.bf16.mxu0 0
      %455 = vmatmul.mubr.bf16.gmra.mrb[0].mxu0 %v234
      %v456 = vpop.f32.mrb[0].mxu0
      %v457 = vadd.f32 %v417, %v456
      %v458 = vpop.f32.mrb[0].mxu0
      %v459 = vpop.f32.mrb[0].mxu0
      %v460 = vpop.f32.mrb[0].mxu0
      %461 = vdwg.mxu0
      %462 = vst [vmem:[%s168] sm:$0xff] %v457
      %p463 = scmp.lt.s32.totalorder %s14, 1
      %s464 = scalar_select %p463, %s14, 1
      %s465 = smul.addr %s464, 8
      %s466 = scalar_lea.vmem %s3, %s465
      // Predicated region
      $region33: #{patch_embed_3d.1} parent=31 // pred_check
        %p467 = pneg %p100
      $region34: #{patch_embed_3d.1} parent=31 // pred_check_branch
        %469 = sbr.rel (%p467) target = $region36
      $region35: #{patch_embed_3d.1} parent=31 // pred_region
        _
      $region36: #{patch_embed_3d.1} parent=31 // pred_fallthru
        _
    $region32: #{patch_embed_3d.1} parent=5 // pred_fallthru
      _
    %p470 = scmp.le.s32.totalorder 2, %s9
    // Predicated region
    $region37: #{patch_embed_3d.1} parent=5 // pred_check
      %p471 = pneg %p470
    $region38: #{patch_embed_3d.1} parent=5 // pred_check_branch
      %473 = sbr.rel (%p471) target = $region40
    $region39: #{patch_embed_3d.1} parent=5 // pred_region
      %s474 = ssub.s32 %s9, 2
      // Predicated region
      $region41: #{patch_embed_3d.1} parent=39 // pred_check
        %p475 = pneg %p106
      $region42: #{patch_embed_3d.1} parent=39 // pred_check_branch
        %477 = sbr.rel (%p475) target = $region44
      $region43: #{patch_embed_3d.1} parent=39 // pred_region
        %p478 = scmp.lt.s32.totalorder %s15, 1
        %s479 = scalar_select %p478, %s15, 1
        %s480 = smul.addr %s479, 8
        %s481 = scalar_lea.vmem %s3, %s480
      $region44: #{patch_embed_3d.1} parent=39 // pred_fallthru
        _
    $region40: #{patch_embed_3d.1} parent=5 // pred_fallthru
      _
  $region6: #{patch_embed_3d.1} parent=0 // loop_footer
    %s13 = sadd.s32 1, %s9
  $region7: #{patch_embed_3d.1} parent=0 // loop_footer_branch
    %8 = sbr.rel target = $region3
  $region8: #{patch_embed_3d.1} parent=0 // loop_exit
    _

</llo_original>
